<compile_context>
chip_gen: v6e
topology: v6e:2x2x1
jax: 0.10.0
libtpu: 0.0.40
codegen_flags: <defaults>
</compile_context>

<pallas_src>
import functools

import jax
import jax.numpy as jnp
from jax.experimental import pallas as pl
from jax.experimental.pallas import tpu as pltpu

MAX_LANE_WIDTH = 1024     # widest lane-dense last dim we try (multiple of 128)
BLOCK_ROWS = 1024         # 1024 x 1024 f32 block = 4 MiB per buffer
MIN_GRID_STEPS = 4        # keep >=2 (ideally 4+) steps: megacore + pipelining
VMEM_LIMIT_BYTES = 32 << 20


def _sublane_multiple(dtype):
    # Second-minor tiling multiple: 8 for 4-byte, 16 for 2-byte, 32 for 1-byte.
    itemsize = jnp.dtype(dtype).itemsize
    return max(8, 32 // max(itemsize, 1))


def _softplus_kernel(x_ref, o_ref, *, beta, inv_beta, threshold):
    # Load in native dtype, compute in f32, store back in native dtype.
    x = x_ref[...].astype(jnp.float32)
    scaled = beta * x
    # Clamp before exp: passthrough branch would otherwise overflow to +inf
    # (benign under where, but the clamp is free insurance).
    soft = jnp.log1p(jnp.exp(jnp.minimum(scaled, threshold))) * inv_beta
    o_ref[...] = jnp.where(scaled > threshold, x, soft).astype(o_ref.dtype)


def _softplus_2d(x2d, beta, inv_beta, threshold):
    """Run the streaming kernel on a lane-dense [rows, lane] slab."""
    rows, lane = x2d.shape
    dtype = x2d.dtype
    sub = _sublane_multiple(dtype)

    if rows <= sub:
        # Tiny input: single block equal to the full array (valid BlockSpec).
        br = rows
    else:
        # Aim for >= MIN_GRID_STEPS grid steps, rounded up to the sublane
        # multiple, capped at BLOCK_ROWS. cdiv grid handles a partial last
        # block (clipped reads / masked writes).
        target = pl.cdiv(rows, MIN_GRID_STEPS)
        target = pl.cdiv(target, sub) * sub
        br = min(BLOCK_ROWS, target, rows)
    grid = (pl.cdiv(rows, br),)

    n = rows * lane
    itemsize = jnp.dtype(dtype).itemsize
    cost = pl.CostEstimate(
        flops=4 * n,
        transcendentals=2 * n,
        bytes_accessed=2 * n * itemsize,
    )

    kernel = functools.partial(
        _softplus_kernel,
        beta=float(beta),
        inv_beta=float(inv_beta),
        threshold=float(threshold),
    )

    return pl.pallas_call(
        kernel,
        out_shape=jax.ShapeDtypeStruct((rows, lane), dtype),
        grid_spec=pltpu.PrefetchScalarGridSpec(
            num_scalar_prefetch=0,
            grid=grid,
            in_specs=[pl.BlockSpec((br, lane), lambda i: (i, 0))],
            out_specs=pl.BlockSpec((br, lane), lambda i: (i, 0)),
        ),
        compiler_params=pltpu.CompilerParams(
            dimension_semantics=("parallel",),
            vmem_limit_bytes=VMEM_LIMIT_BYTES,
        ),
        cost_estimate=cost,
    )(x2d)


def _softplus_jnp(xt, beta, inv_beta, threshold, dtype):
    """Plain-jnp fallback for the small ragged tail (< MAX_LANE_WIDTH elems)."""
    xf = xt.astype(jnp.float32)
    scaled = beta * xf
    soft = jnp.log1p(jnp.exp(jnp.minimum(scaled, threshold))) * inv_beta
    return jnp.where(scaled > threshold, xf, soft).astype(dtype)


def custom_softplus(x, beta=1.0, threshold=20.0):
    """Elementwise softplus matching CustomSoftplus.forward. Any input shape."""
    assert beta != 0.0, "beta must be nonzero"
    orig_shape = x.shape
    dtype = x.dtype
    beta = float(beta)
    threshold = float(threshold)
    inv_beta = 1.0 / beta

    xf = x.reshape(-1)
    n = xf.shape[0]
    if n == 0:
        return x

    # Pick the widest lane-dense width that divides n exactly: no pad, no
    # extra HBM pass, unmasked stores.
    lane = None
    for lw in (1024, 512, 256, 128):
        if n % lw == 0:
            lane = lw
            break

    if lane is not None:
        out2d = _softplus_2d(xf.reshape(n // lane, lane), beta, inv_beta, threshold)
        return out2d.reshape(orig_shape)

    # Truly ragged n: kernel on the lane-aligned bulk, plain jnp on the tail
    # (< MAX_LANE_WIDTH elements) instead of padding/slicing the whole array.
    bulk = (n // MAX_LANE_WIDTH) * MAX_LANE_WIDTH
    parts = []
    if bulk > 0:
        xb = xf[:bulk].reshape(bulk // MAX_LANE_WIDTH, MAX_LANE_WIDTH)
        parts.append(_softplus_2d(xb, beta, inv_beta, threshold).reshape(-1))
    if bulk < n:
        parts.append(_softplus_jnp(xf[bulk:], beta, inv_beta, threshold, dtype))
    out = parts[0] if len(parts) == 1 else jnp.concatenate(parts)
    return out.reshape(orig_shape)


def _reference_softplus(x, beta=1.0, threshold=20.0):
    xf = x.astype(jnp.float32)
    scaled = beta * xf
    ref = jnp.where(scaled > threshold, xf, jnp.log(1.0 + jnp.exp(scaled)) / beta)
    return ref.astype(x.dtype)


if __name__ == "__main__":
    key = jax.random.PRNGKey(0)
    # NCHW input, same convention as the PyTorch module would receive.
    x = jax.random.normal(key, (2, 4, 16, 16), dtype=jnp.float32) * 5.0
    # Include values above the threshold to exercise the passthrough branch.
    x = x.at[0, 0, 0, :4].set(
        jnp.array([25.0, 30.0, 19.9, 20.1], dtype=jnp.float32)
    )

    beta, threshold = 1.0, 20.0
    out = custom_softplus(x, beta=beta, threshold=threshold)
    out = jax.block_until_ready(out)

    ref = _reference_softplus(x, beta=beta, threshold=threshold)
    assert out.shape == x.shape and out.dtype == x.dtype
    assert jnp.allclose(out, ref, atol=1e-5, rtol=1e-5), "mismatch vs reference"

    # Also exercise a ragged size (non-multiple of 128) through the bulk+tail path.
    x2 = jax.random.normal(jax.random.PRNGKey(1), (3, 5, 7, 11), dtype=jnp.float32) * 5.0
    out2 = jax.block_until_ready(custom_softplus(x2, beta=0.5, threshold=20.0))
    ref2 = _reference_softplus(x2, beta=0.5, threshold=20.0)
    assert jnp.allclose(out2, ref2, atol=1e-5, rtol=1e-5), "mismatch vs reference (ragged)"

    print("KERNEL_OK")
</pallas_src>

<mosaic_0001>
module attributes {stable_mosaic.version = 11 : i64} {
  func.func @_softplus_kernel(%arg0: i32, %arg1: memref<2x1024xf32, #tpu.memory_space<vmem>>, %arg2: memref<2x1024xf32, #tpu.memory_space<vmem>>) attributes {dimension_semantics = [#tpu.dimension_semantics<parallel>], iteration_bounds = array<i64: 1>, scalar_prefetch = 0 : i64, scratch_operands = 0 : i64, tpu.core_type = #tpu.core_type<tc>, window_params = [{transform_indices = @transform_0, window_bounds = array<i64: 2, 1024>}, {transform_indices = @transform_1, window_bounds = array<i64: 2, 1024>}]} {
    %c0 = arith.constant 0 : index
    %c0_0 = arith.constant 0 : index
    %0 = vector.load %arg1[%c0, %c0_0] : memref<2x1024xf32, #tpu.memory_space<vmem>>, vector<2x1024xf32>
    %cst = arith.constant 1.000000e+00 : f32
    %1 = vector.broadcast %cst : f32 to vector<2x1024xf32>
    %2 = arith.mulf %1, %0 : vector<2x1024xf32>
    %cst_1 = arith.constant 2.000000e+01 : f32
    %3 = vector.broadcast %cst_1 : f32 to vector<2x1024xf32>
    %4 = arith.minimumf %2, %3 : vector<2x1024xf32>
    %5 = math.exp %4 : vector<2x1024xf32>
    %6 = math.log1p %5 : vector<2x1024xf32>
    %cst_2 = arith.constant 1.000000e+00 : f32
    %7 = vector.broadcast %cst_2 : f32 to vector<2x1024xf32>
    %8 = arith.mulf %6, %7 : vector<2x1024xf32>
    %cst_3 = arith.constant 2.000000e+01 : f32
    %9 = vector.broadcast %cst_3 : f32 to vector<2x1024xf32>
    %10 = arith.cmpf ogt, %2, %9 : vector<2x1024xf32>
    %11 = arith.select %10, %0, %8 : vector<2x1024xi1>, vector<2x1024xf32>
    %c0_4 = arith.constant 0 : index
    %c0_5 = arith.constant 0 : index
    %12 = vector.load %arg2[%c0_4, %c0_5] : memref<2x1024xf32, #tpu.memory_space<vmem>>, vector<2x1024xf32>
    tpu.vector_store %arg2[%c0_4, %c0_5], %11 {strides = array<i32>} : memref<2x1024xf32, #tpu.memory_space<vmem>>, vector<2x1024xf32>,
    return
  }
  func.func @transform_0(%arg0: i32) -> (i32, i32) {
    %c0_i32 = arith.constant 0 : i32
    %c0_i32_0 = arith.constant 0 : i32
    return %arg0, %c0_i32 : i32, i32
  }
  func.func @transform_1(%arg0: i32) -> (i32, i32) {
    %c0_i32 = arith.constant 0 : i32
    %c0_i32_0 = arith.constant 0 : i32
    return %arg0, %c0_i32 : i32, i32
  }
}

</mosaic_0001>

<llo_original>
// kernel: tpu_custom_call.1
$region0: #{tpu_custom_call.1}
  #allocation0 [shape = 'u32[]', space=smem, size = 0x4, offset = 0x4, fixed_abs, tag = 'smem constant byte address 0x4 - core index']
  #allocation1 [shape = 'u32[144,128]{1,0:T(1,128)}', space=vmem, size = 0x12000, scoped, tag = 'internal scratch']
  %s0 = inlined_call_operand.hbm [shape: f32[2,1024], index: 0, kind: input, shape index: {}]
  %s1 = inlined_call_operand.hbm [shape: f32[2,1024], index: 1, kind: output, shape index: {}]
  %s2 = sld [smem:[#allocation0]]
  $region18: #{tpu_custom_call.1} parent=0
    _
  %s4 = ssub.s32 1, %s2
  %s5 = scalar_select 0, %s4, %s2
  $region1: #{tpu_custom_call.1} parent=0
    #allocation2 [shape = 'u8[8192]{0}', space=vmem, size = 0x2000, scoped, tag = 'input window, operand 0, single buffered']
    #allocation3 [shape = 's32[1]{0}', space=sflag, size = 0x4, scoped, tag = 'scoped memory for tpu_custom_call.1']
    #allocation4 [shape = 's32[1]{0}', space=sflag, size = 0x4, scoped, tag = 'scoped memory for tpu_custom_call.1']
    #allocation5 [shape = 'u8[8192]{0}', space=vmem, size = 0x2000, scoped, tag = 'output window, operand 0, single buffered']
    %6 = vsyncpa [#allocation3], 0
    %7 = vsyncpa [#allocation4], 0
    // Predicated region
    $region2: #{tpu_custom_call.1} parent=1 // pred_check
      _
    $region3: #{tpu_custom_call.1} parent=1 // pred_check_branch
      %9 = sbr.rel (0) target = $region5
    $region4: #{tpu_custom_call.1} parent=1 // pred_region
      %s11 = ssub.s32 256, 256
      %12 = vsyncadd [#allocation3], %s11
      %s14 = sshll.u32 [#allocation2], 4
      %s15 = int_to_ptr.vmem [resolvable:$true] %s14
      %17 = dma.hbm_to_vmem [thread:$0]  %s0, 256, %s15, [#allocation3]
    $region5: #{tpu_custom_call.1} parent=1 // pred_fallthru
      _
    // Predicated region
    $region6: #{tpu_custom_call.1} parent=1 // pred_check
      _
    $region7: #{tpu_custom_call.1} parent=1 // pred_check_branch
      %19 = sbr.rel (0) target = $region9
    $region8: #{tpu_custom_call.1} parent=1 // pred_region
      %20 = dma.done [#allocation3], 256
    $region9: #{tpu_custom_call.1} parent=1 // pred_fallthru
      _
    %v21 = vld [vmem:[#allocation2] sm:$0xff]
    %v22 = vld [vmem:[#allocation2 + $0x8] sm:$0xff]
    %v23 = vmin.f32 %v21, 20.0
    %v24 = vmin.f32 %v22, 20.0
    %v25 = vmul.f32 %v23, 1.442695
    %v26 = vpow.pop %v25
    %v27 = vmul.f32 %v24, 1.442695
    %v28 = vpow.pop %v27
    %v29 = vadd.f32 %v26, 1.0
    %v30 = vlog2.pop %v29
    %v31 = vmul.f32 %v30, 0.6931472
    %v32 = vmul.f32 -0.5, %v26
    %v33 = vadd.f32 %v32, 1.0
    %v34 = vmul.f32 %v33, %v26
    %v35 = vand.u32 2147483647, %v26
    %vm36 = vcmp.lt.f32.partialorder %v35, 0.0004427343
    %v37 = vsel %vm36, %v34, %v31
    %v38 = vadd.f32 %v28, 1.0
    %v39 = vlog2.pop %v38
    %v40 = vmul.f32 %v39, 0.6931472
    %v41 = vmul.f32 -0.5, %v28
    %v42 = vadd.f32 %v41, 1.0
    %v43 = vmul.f32 %v42, %v28
    %v44 = vand.u32 2147483647, %v28
    %vm45 = vcmp.lt.f32.partialorder %v44, 0.0004427343
    %v46 = vsel %vm45, %v43, %v40
    %vm47 = vcmp.gt.f32.partialorder %v21, 20.0
    %vm48 = vcmp.gt.f32.partialorder %v22, 20.0
    %v49 = vsel %vm47, %v21, %v37
    %v50 = vsel %vm48, %v22, %v46
    %51 = vst [vmem:[#allocation5] sm:$0xff] %v49
    %52 = vst [vmem:[#allocation5 + $0x8] sm:$0xff] %v50
    // Predicated region
    $region10: #{tpu_custom_call.1} parent=1 // pred_check
      _
    $region11: #{tpu_custom_call.1} parent=1 // pred_check_branch
      %54 = sbr.rel (0) target = $region13
    $region12: #{tpu_custom_call.1} parent=1 // pred_region
      %s56 = ssub.s32 256, 256
      %57 = vsyncadd [#allocation4], %s56
      %s59 = sshll.u32 [#allocation5], 4
      %s60 = int_to_ptr.vmem [resolvable:$true] %s59
      %62 = dma.vmem_to_hbm [thread:$0]  %s60, 256, %s1, [#allocation4]
    $region13: #{tpu_custom_call.1} parent=1 // pred_fallthru
      _
    // Predicated region
    $region14: #{tpu_custom_call.1} parent=1 // pred_check
      _
    $region15: #{tpu_custom_call.1} parent=1 // pred_check_branch
      %64 = sbr.rel (0) target = $region17
    $region16: #{tpu_custom_call.1} parent=1 // pred_region
      %65 = dma.done [#allocation4], 256
    $region17: #{tpu_custom_call.1} parent=1 // pred_fallthru
      _
    %66 = vsyncpa [#allocation3], 1
    %67 = vsyncpa [#allocation4], 1

</llo_original>
